<compile_context>
chip_gen: v7x
topology: tpu7x:2x2x1
jax: 0.10.0
libtpu: 0.0.40
codegen_flags: <defaults>
</compile_context>

<pallas_src>
import math
from functools import partial

import jax
import jax.numpy as jnp
from jax import lax
from jax.experimental import pallas as pl
from jax.experimental.pallas import tpu as pltpu


# --------------------------------------------------------------------------------------
# Pallas kernels
# --------------------------------------------------------------------------------------

def _sigmoid(x):
    return 1.0 / (1.0 + jnp.exp(-x))


def _linear_kernel(x_ref, w_ref, b_ref, o_ref, *, relu):
    """One (TM, K) row tile: o = x @ w + b, optionally clamped at 0 (fused ReLU)."""
    acc = jnp.dot(x_ref[...], w_ref[...], preferred_element_type=jnp.float32)
    acc = acc + b_ref[...]
    if relu:
        acc = jnp.maximum(acc, 0.0)
    o_ref[...] = acc.astype(o_ref.dtype)


def _pallas_linear(x, w, b, *, relu=False):
    """x: (M, K), w: (K, N), b: (N,) -> (M, N), tiled over rows."""
    M, K = x.shape
    N = w.shape[1]
    # Pick a row tile that divides M (keeps every block full / unmasked).
    TM = M
    for t in (512, 256, 128, 64, 32, 16, 8):
        if M >= t and M % t == 0:
            TM = t
            break
    grid = (M // TM,)
    return pl.pallas_call(
        partial(_linear_kernel, relu=relu),
        out_shape=jax.ShapeDtypeStruct((M, N), jnp.float32),
        grid_spec=pltpu.PrefetchScalarGridSpec(
            num_scalar_prefetch=0,
            grid=grid,
            in_specs=[
                pl.BlockSpec((TM, K), lambda i: (i, 0)),
                pl.BlockSpec((K, N), lambda i: (0, 0)),   # grid-invariant weights
                pl.BlockSpec((1, N), lambda i: (0, 0)),   # grid-invariant bias
            ],
            out_specs=pl.BlockSpec((TM, N), lambda i: (i, 0)),
        ),
        compiler_params=pltpu.CompilerParams(
            dimension_semantics=("parallel",),
        ),
    )(x, w, b.reshape(1, N))


def _lstm_seq_kernel(xproj_ref, whh_ref, hout_ref, h_scr, c_scr, *,
                     hidden, num_dir, unroll):
    """Whole-sequence LSTM recurrence for one layer (all directions), single invocation.

    xproj_ref: (T, B, D*4H)  precomputed x_t @ W_ih^T + (b_ih + b_hh), directions concatenated
    whh_ref:   (D, H, 4H)    transposed recurrent weights (VMEM-resident for the whole loop)
    hout_ref:  (T, B, D*H)   hidden outputs, torch layout (fwd | bwd concatenated on features)
    h_scr/c_scr: (B, D*H)    VMEM carries
    """
    T = xproj_ref.shape[0]
    G = 4 * hidden

    h_scr[...] = jnp.zeros_like(h_scr)
    c_scr[...] = jnp.zeros_like(c_scr)

    def step(t, carry):
        for d in range(num_dir):           # static unrolled direction loop
            tt = t if d == 0 else T - 1 - t
            h_prev = h_scr[:, d * hidden:(d + 1) * hidden]
            c_prev = c_scr[:, d * hidden:(d + 1) * hidden]
            # (B, 4H): lane-aligned 4H=128 slice of the projected inputs + small MXU dot.
            gates = xproj_ref[tt, :, d * G:(d + 1) * G] + jnp.dot(
                h_prev, whh_ref[d], preferred_element_type=jnp.float32
            )  # torch gate order: i, f, g, o
            i = _sigmoid(gates[:, 0 * hidden:1 * hidden])
            f = _sigmoid(gates[:, 1 * hidden:2 * hidden])
            g = jnp.tanh(gates[:, 2 * hidden:3 * hidden])
            o = _sigmoid(gates[:, 3 * hidden:4 * hidden])
            c = f * c_prev + i * g
            h = o * jnp.tanh(c)
            h_scr[:, d * hidden:(d + 1) * hidden] = h
            c_scr[:, d * hidden:(d + 1) * hidden] = c
            hout_ref[tt, :, d * hidden:(d + 1) * hidden] = h
        return carry

    lax.fori_loop(0, T, step, 0, unroll=unroll)


def _pallas_lstm_layer(xproj_tm, whh, hidden, num_dir):
    """Run one layer's recurrence (all directions).

    xproj_tm: (T, B, D*4H) time-major projected inputs; whh: (D, H, 4H).
    Returns (T, B, D*H) time-major hidden states in torch's fwd|bwd feature layout.
    """
    T, B, _ = xproj_tm.shape
    unroll = bool(T <= 32)  # short fixed loops: full unroll for LLO scheduler visibility
    return pl.pallas_call(
        partial(_lstm_seq_kernel, hidden=hidden, num_dir=num_dir, unroll=unroll),
        out_shape=jax.ShapeDtypeStruct((T, B, num_dir * hidden), jnp.float32),
        grid_spec=pltpu.PrefetchScalarGridSpec(
            num_scalar_prefetch=0,
            grid=(1,),
            in_specs=[
                pl.BlockSpec((T, B, num_dir * 4 * hidden), lambda i: (0, 0, 0)),
                pl.BlockSpec((num_dir, hidden, 4 * hidden), lambda i: (0, 0, 0)),
            ],
            out_specs=pl.BlockSpec((T, B, num_dir * hidden), lambda i: (0, 0, 0)),
            scratch_shapes=[
                pltpu.VMEM((B, num_dir * hidden), jnp.float32),  # h carry
                pltpu.VMEM((B, num_dir * hidden), jnp.float32),  # c carry
            ],
        ),
        compiler_params=pltpu.CompilerParams(
            dimension_semantics=("arbitrary",),  # sequential recurrence
        ),
    )(xproj_tm, whh)


# --------------------------------------------------------------------------------------
# Module wrapper (mirrors the PyTorch LSTM module's forward pass)
# --------------------------------------------------------------------------------------

class LSTM:
    def __init__(self, feat_size, hidden_size, num_layers, bidirectional, key):
        self.feat_size = feat_size
        self.hidden_size = hidden_size
        self.num_layers = num_layers
        self.bidirectional = bidirectional
        num_dir = 2 if bidirectional else 1
        self.num_directions = num_dir

        std = 1.0 / math.sqrt(hidden_size)  # torch.nn.LSTM default init range
        self.layers_raw = []   # per-direction params (used by the pure-JAX reference)
        self.layers = []       # packed params consumed by the Pallas kernels
        for layer in range(num_layers):
            in_size = feat_size if layer == 0 else hidden_size * num_dir
            dirs = []
            for _ in range(num_dir):
                key, k1, k2, k3, k4 = jax.random.split(key, 5)
                w_ih = jax.random.uniform(k1, (4 * hidden_size, in_size), jnp.float32, -std, std)
                w_hh = jax.random.uniform(k2, (4 * hidden_size, hidden_size), jnp.float32, -std, std)
                b_ih = jax.random.uniform(k3, (4 * hidden_size,), jnp.float32, -std, std)
                b_hh = jax.random.uniform(k4, (4 * hidden_size,), jnp.float32, -std, std)
                dirs.append({
                    "w_ih_t": jnp.transpose(w_ih),   # (in, 4H)
                    "w_hh_t": jnp.transpose(w_hh),   # (H, 4H)
                    "bias": b_ih + b_hh,             # fold both biases into one row
                })
            self.layers_raw.append(dirs)
            self.layers.append({
                # both directions packed for one bulk input projection per layer
                "w_ih_t": jnp.concatenate([d["w_ih_t"] for d in dirs], axis=1),  # (in, D*4H)
                "bias": jnp.concatenate([d["bias"] for d in dirs], axis=0),      # (D*4H,)
                "w_hh": jnp.stack([d["w_hh_t"] for d in dirs], axis=0),          # (D, H, 4H)
            })

        out_in = hidden_size * num_dir
        std_l = 1.0 / math.sqrt(out_in)  # torch.nn.Linear default init range
        key, k1, k2 = jax.random.split(key, 3)
        self.w_out_t = jax.random.uniform(k1, (out_in, feat_size), jnp.float32, -std_l, std_l)
        self.b_out = jax.random.uniform(k2, (feat_size,), jnp.float32, -std_l, std_l)

    def __call__(self, specs):
        # specs: (B, T, feat_size), batch_first like the torch module.
        B, T, _ = specs.shape
        H = self.hidden_size
        D = self.num_directions

        # Single entry transpose; everything stays time-major through the layer stack.
        x_tm = jnp.transpose(specs.astype(jnp.float32), (1, 0, 2))   # (T, B, F)

        for p in self.layers:
            # Bulk input projection for all timesteps & both directions: one lane-dense MXU pass.
            xproj = _pallas_linear(x_tm.reshape(T * B, -1), p["w_ih_t"], p["bias"])
            xproj = xproj.reshape(T, B, D * 4 * H)                   # (T, B, D*4H)
            x_tm = _pallas_lstm_layer(xproj, p["w_hh"], H, D)        # (T, B, D*H)

        # scaling_layer + torch.clamp(min=0), fused as linear-with-ReLU; single exit transpose.
        out = _pallas_linear(x_tm.reshape(T * B, -1), self.w_out_t, self.b_out, relu=True)
        out = out.reshape(T, B, self.feat_size)
        return jnp.transpose(out, (1, 0, 2))                         # (B, T, F)


# --------------------------------------------------------------------------------------
# Pure-JAX reference (for correctness check; uses the raw per-direction params)
# --------------------------------------------------------------------------------------

def _ref_forward(model, specs):
    B, T, _ = specs.shape
    H = model.hidden_size
    hi = jax.lax.Precision.HIGHEST
    x = specs.astype(jnp.float32)
    for layer_params in model.layers_raw:
        dir_outs = []
        for d, p in enumerate(layer_params):
            xd = x[:, ::-1, :] if d == 1 else x
            xproj = jnp.matmul(xd, p["w_ih_t"], precision=hi) + p["bias"]   # (B, T, 4H)
            w_hh_t = p["w_hh_t"]

            def step(carry, g_t, w_hh_t=w_hh_t):
                h, c = carry
                gates = g_t + jnp.matmul(h, w_hh_t, precision=hi)
                i = _sigmoid(gates[:, 0 * H:1 * H])
                f = _sigmoid(gates[:, 1 * H:2 * H])
                g = jnp.tanh(gates[:, 2 * H:3 * H])
                o = _sigmoid(gates[:, 3 * H:4 * H])
                c = f * c + i * g
                h = o * jnp.tanh(c)
                return (h, c), h

            init = (jnp.zeros((B, H), jnp.float32), jnp.zeros((B, H), jnp.float32))
            _, hs = lax.scan(step, init, jnp.transpose(xproj, (1, 0, 2)))
            h_bth = jnp.transpose(hs, (1, 0, 2))
            if d == 1:
                h_bth = h_bth[:, ::-1, :]
            dir_outs.append(h_bth)
        x = jnp.concatenate(dir_outs, axis=-1) if len(dir_outs) > 1 else dir_outs[0]
    out = jnp.matmul(x.reshape(B * T, -1), model.w_out_t, precision=hi) + model.b_out
    out = jnp.maximum(out, 0.0)
    return out.reshape(B, T, model.feat_size)


if __name__ == "__main__":
    # Small shapes consistent with the module: batch=2, seq=8, feat=64, hidden=32, 2 layers, bidir.
    B, T = 2, 8
    feat_size, hidden_size, num_layers, bidirectional = 64, 32, 2, True

    key = jax.random.PRNGKey(0)
    key, wkey, xkey = jax.random.split(key, 3)
    model = LSTM(feat_size, hidden_size, num_layers, bidirectional, wkey)
    specs = jax.random.normal(xkey, (B, T, feat_size), dtype=jnp.float32)

    out = model(specs)
    jax.block_until_ready(out)

    ref = _ref_forward(model, specs)
    assert out.shape == (B, T, feat_size), out.shape
    assert bool(jnp.all(jnp.isfinite(out)))
    max_err = float(jnp.max(jnp.abs(out - ref)))
    assert max_err < 5e-2, f"max abs error vs reference: {max_err}"
    print("KERNEL_OK")
</pallas_src>

<mosaic_0001>
module attributes {stable_mosaic.version = 11 : i64} {
  func.func @_linear_kernel(%arg0: i32, %arg1: memref<16x64xf32, #tpu.memory_space<vmem>>, %arg2: memref<64x256xf32, #tpu.memory_space<vmem>>, %arg3: memref<1x256xf32, #tpu.memory_space<vmem>>, %arg4: memref<16x256xf32, #tpu.memory_space<vmem>>) attributes {dimension_semantics = [#tpu.dimension_semantics<parallel>], iteration_bounds = array<i64: 1>, scalar_prefetch = 0 : i64, scratch_operands = 0 : i64, tpu.core_type = #tpu.core_type<tc>, window_params = [{transform_indices = @transform_0, window_bounds = array<i64: 16, 64>}, {pipeline_mode = #tpu.pipeline_mode<synchronous>, transform_indices = @transform_1, window_bounds = array<i64: 64, 256>}, {pipeline_mode = #tpu.pipeline_mode<synchronous>, transform_indices = @transform_2, window_bounds = array<i64: 1, 256>}, {transform_indices = @transform_3, window_bounds = array<i64: 16, 256>}]} {
    %c0 = arith.constant 0 : index
    %c0_0 = arith.constant 0 : index
    %0 = vector.load %arg1[%c0, %c0_0] : memref<16x64xf32, #tpu.memory_space<vmem>>, vector<16x64xf32>
    %c0_1 = arith.constant 0 : index
    %c0_2 = arith.constant 0 : index
    %1 = vector.load %arg2[%c0_1, %c0_2] : memref<64x256xf32, #tpu.memory_space<vmem>>, vector<64x256xf32>
    %cst = arith.constant dense<0.000000e+00> : vector<16x256xf32>
    %2 = tpu.matmul %0, %1, %cst {dimension_numbers = #tpu.dot_dimension_numbers<[1], [0], [0], [1], [0, 0, 1, 1], [], []>} : vector<16x64xf32>, vector<64x256xf32>, vector<16x256xf32> -> vector<16x256xf32>
    %c0_3 = arith.constant 0 : index
    %c0_4 = arith.constant 0 : index
    %3 = vector.load %arg3[%c0_3, %c0_4] : memref<1x256xf32, #tpu.memory_space<vmem>>, vector<1x256xf32>
    %4 = vector.broadcast %3 : vector<1x256xf32> to vector<16x256xf32>
    %5 = arith.addf %2, %4 : vector<16x256xf32>
    %c0_5 = arith.constant 0 : index
    %c0_6 = arith.constant 0 : index
    %6 = vector.load %arg4[%c0_5, %c0_6] : memref<16x256xf32, #tpu.memory_space<vmem>>, vector<16x256xf32>
    tpu.vector_store %arg4[%c0_5, %c0_6], %5 {strides = array<i32>} : memref<16x256xf32, #tpu.memory_space<vmem>>, vector<16x256xf32>,
    return
  }
  func.func @transform_0(%arg0: i32) -> (i32, i32) {
    %c0_i32 = arith.constant 0 : i32
    %c0_i32_0 = arith.constant 0 : i32
    return %arg0, %c0_i32 : i32, i32
  }
  func.func @transform_1(%arg0: i32) -> (i32, i32) {
    %c0_i32 = arith.constant 0 : i32
    %c0_i32_0 = arith.constant 0 : i32
    %c0_i32_1 = arith.constant 0 : i32
    return %c0_i32, %c0_i32_0 : i32, i32
  }
  func.func @transform_2(%arg0: i32) -> (i32, i32) {
    %c0_i32 = arith.constant 0 : i32
    %c0_i32_0 = arith.constant 0 : i32
    %c0_i32_1 = arith.constant 0 : i32
    return %c0_i32, %c0_i32_0 : i32, i32
  }
  func.func @transform_3(%arg0: i32) -> (i32, i32) {
    %c0_i32 = arith.constant 0 : i32
    %c0_i32_0 = arith.constant 0 : i32
    return %arg0, %c0_i32 : i32, i32
  }
}

</mosaic_0001>

<llo_original>
// kernel: tpu_custom_call.1
$region0: #{tpu_custom_call.1}
  #allocation0 [shape = 'u32[]', space=smem, size = 0x4, offset = 0x4, fixed_abs, tag = 'smem constant byte address 0x4 - core index']
  #allocation1 [shape = 'u32[144,128]{1,0:T(1,128)}', space=vmem, size = 0x12000, scoped, tag = 'internal scratch']
  %s0 = inlined_call_operand.hbm [shape: f32[16,64], index: 0, kind: input, shape index: {}]
  %s1 = inlined_call_operand.hbm [shape: f32[64,256], index: 1, kind: input, shape index: {}]
  %s2 = inlined_call_operand.vmem [shape: f32[1,256], index: 2, kind: input, shape index: {}]
  %s3 = inlined_call_operand.hbm [shape: f32[16,256], index: 3, kind: output, shape index: {}]
  %s4 = sld [smem:[#allocation0]]
  $region30: #{tpu_custom_call.1} parent=0
    _
  %s6 = ssub.s32 1, %s4
  %s7 = scalar_select 0, %s6, %s4
  $region1: #{tpu_custom_call.1} parent=0
    #allocation2 [shape = 'u8[8192]{0}', space=vmem, size = 0x2000, scoped, tag = 'input window, operand 0, single buffered']
    #allocation3 [shape = 's32[1]{0}', space=sflag, size = 0x4, scoped, tag = 'scoped memory for tpu_custom_call.1']
    #allocation4 [shape = 's32[1]{0}', space=sflag, size = 0x4, scoped, tag = 'scoped memory for tpu_custom_call.1']
    #allocation5 [shape = 'u8[65536]{0}', space=vmem, size = 0x10000, scoped, tag = 'input window, operand 1, single buffered']
    #allocation6 [shape = 's32[1]{0}', space=sflag, size = 0x4, scoped, tag = 'scoped memory for tpu_custom_call.1']
    #allocation7 [shape = 'u8[16384]{0}', space=vmem, size = 0x4000, scoped, tag = 'output window, operand 0, single buffered']
    %8 = vsyncpa [#allocation3], 0
    %9 = vsyncpa [#allocation6], 0
    %10 = vsyncpa [#allocation4], 0
    // Predicated region
    $region2: #{tpu_custom_call.1} parent=1 // pred_check
      _
    $region3: #{tpu_custom_call.1} parent=1 // pred_check_branch
      %12 = sbr.rel (0) target = $region5
    $region4: #{tpu_custom_call.1} parent=1 // pred_region
      %s14 = ssub.s32 256, 256
      %15 = vsyncadd [#allocation3], %s14
      %s16 = sshll.u32 [#allocation2], 4
      %s17 = int_to_ptr.vmem [resolvable:$true] %s16
      %22 = dma.hbm_to_vmem [thread:$0]  %s0, 256, %s17, [#allocation3], 128, 128, 8
    $region5: #{tpu_custom_call.1} parent=1 // pred_fallthru
      _
    // Predicated region
    $region6: #{tpu_custom_call.1} parent=1 // pred_check
      _
    $region7: #{tpu_custom_call.1} parent=1 // pred_check_branch
      %24 = sbr.rel (0) target = $region9
    $region8: #{tpu_custom_call.1} parent=1 // pred_region
      %s26 = ssub.s32 2048, 2048
      %27 = vsyncadd [#allocation6], %s26
      %s28 = sshll.u32 [#allocation5], 4
      %s29 = int_to_ptr.vmem [resolvable:$true] %s28
      %34 = dma.hbm_to_vmem [thread:$0]  %s1, 2048, %s29, [#allocation6], 256, 256, 16
    $region9: #{tpu_custom_call.1} parent=1 // pred_fallthru
      _
    // Predicated region
    $region10: #{tpu_custom_call.1} parent=1 // pred_check
      _
    $region11: #{tpu_custom_call.1} parent=1 // pred_check_branch
      %36 = sbr.rel (0) target = $region13
    $region12: #{tpu_custom_call.1} parent=1 // pred_region
      _
    $region13: #{tpu_custom_call.1} parent=1 // pred_fallthru
      _
    // Predicated region
    $region14: #{tpu_custom_call.1} parent=1 // pred_check
      _
    $region15: #{tpu_custom_call.1} parent=1 // pred_check_branch
      %38 = sbr.rel (0) target = $region17
    $region16: #{tpu_custom_call.1} parent=1 // pred_region
      %39 = dma.done [#allocation3], 256
    $region17: #{tpu_custom_call.1} parent=1 // pred_fallthru
      _
    // Predicated region
    $region18: #{tpu_custom_call.1} parent=1 // pred_check
      _
    $region19: #{tpu_custom_call.1} parent=1 // pred_check_branch
      %41 = sbr.rel (0) target = $region21
    $region20: #{tpu_custom_call.1} parent=1 // pred_region
      %42 = dma.done [#allocation6], 2048
    $region21: #{tpu_custom_call.1} parent=1 // pred_fallthru
      _
    %v43 = vld [vmem:[#allocation2] sm:$0xff]
    %v44 = vld [vmem:[#allocation2 + $0x8] sm:$0xff]
    %v45 = vld [vmem:[#allocation5] sm:$0xff]
    %v46 = vld [vmem:[#allocation5 + $0x8] sm:$0xff]
    %v47 = vld [vmem:[#allocation5 + $0x10] sm:$0xff]
    %v48 = vld [vmem:[#allocation5 + $0x18] sm:$0xff]
    %v49 = vld [vmem:[#allocation5 + $0x20] sm:$0xff]
    %v50 = vld [vmem:[#allocation5 + $0x28] sm:$0xff]
    %v51 = vld [vmem:[#allocation5 + $0x30] sm:$0xff]
    %v52 = vld [vmem:[#allocation5 + $0x38] sm:$0xff]
    %v53 = vld [vmem:[#allocation5 + $0x40] sm:$0xff]
    %v54 = vld [vmem:[#allocation5 + $0x48] sm:$0xff]
    %v55 = vld [vmem:[#allocation5 + $0x50] sm:$0xff]
    %v56 = vld [vmem:[#allocation5 + $0x58] sm:$0xff]
    %v57 = vld [vmem:[#allocation5 + $0x60] sm:$0xff]
    %v58 = vld [vmem:[#allocation5 + $0x68] sm:$0xff]
    %v59 = vld [vmem:[#allocation5 + $0x70] sm:$0xff]
    %v60 = vld [vmem:[#allocation5 + $0x78] sm:$0xff]
    %v61 = vld [vmem:[%s2] sm:$0x3]
    %v63 = vlaneseq
    %v64 = vshrl.u32 %v63, 7
    %v65 = vsub.s32 0, %v64
    %v66 = vrot.slane %v61, %v65
    %v67 = vlaneseq
    %v68 = vshrl.u32 %v67, 7
    %v69 = vsub.s32 1, %v68
    %v70 = vrot.slane %v61, %v69
    %vm73 = vcmask 523264
    %v75 = vsel %vm73, %v43, 0
    %v78 = vsel %vm73, %v44, 0
    %80 = vmatprep.subr.mxu0 %v46
    %81 = vmatpush1.msra.mxu0 %v45
    %82 = vmatprep.subr.mxu0 %v48
    %83 = vmatpush1.msra.mxu0 %v47
    %84 = vmatprep.subr.mxu0 %v50
    %85 = vmatpush1.msra.mxu0 %v49
    %86 = vmatprep.subr.mxu0 %v52
    %87 = vmatpush1.msra.mxu0 %v51
    %88 = vmatprep.subr.mxu0 %v54
    %89 = vmatpush1.msra.mxu0 %v53
    %90 = vmatprep.subr.mxu0 %v56
    %91 = vmatpush1.msra.mxu0 %v55
    %92 = vmatprep.subr.mxu0 %v58
    %93 = vmatpush1.msra.mxu0 %v57
    %94 = vmatprep.subr.mxu0 %v60
    %95 = vmatpush1.msra.mxu0 %v59
    %96 = vmatprep.subr.mxu0 0.0
    %97 = vmatpush1.msra.mxu0 0.0
    %98 = vmatprep.subr.mxu0 0.0
    %99 = vmatpush1.msra.mxu0 0.0
    %100 = vmatprep.subr.mxu0 0.0
    %101 = vmatpush1.msra.mxu0 0.0
    %102 = vmatprep.subr.mxu0 0.0
    %103 = vmatpush1.msra.mxu0 0.0
    %104 = vmatprep.subr.mxu0 0.0
    %105 = vmatpush1.msra.mxu0 0.0
    %106 = vmatprep.subr.mxu0 0.0
    %107 = vmatpush1.msra.mxu0 0.0
    %108 = vmatprep.subr.mxu0 0.0
    %109 = vmatpush1.msra.mxu0 0.0
    %110 = vmatprep.subr.mxu0 0.0
    %111 = vmatpush1.msra.mxu0 0.0
    %112 = vmatprep.subr.mxu0 0.0
    %113 = vmatpush1.msra.mxu0 0.0
    %114 = vmatprep.subr.mxu0 0.0
    %115 = vmatpush1.msra.mxu0 0.0
    %116 = vmatprep.subr.mxu0 0.0
    %117 = vmatpush1.msra.mxu0 0.0
    %118 = vmatprep.subr.mxu0 0.0
    %119 = vmatpush1.msra.mxu0 0.0
    %120 = vmatprep.subr.mxu0 0.0
    %121 = vmatpush1.msra.mxu0 0.0
    %122 = vmatprep.subr.mxu0 0.0
    %123 = vmatpush1.msra.mxu0 0.0
    %124 = vmatprep.subr.mxu0 0.0
    %125 = vmatpush1.msra.mxu0 0.0
    %126 = vmatprep.subr.mxu0 0.0
    %127 = vmatpush1.msra.mxu0 0.0
    %128 = vmatprep.subr.mxu0 0.0
    %129 = vmatpush1.msra.mxu0 0.0
    %130 = vmatprep.subr.mxu0 0.0
    %131 = vmatpush1.msra.mxu0 0.0
    %132 = vmatprep.subr.mxu0 0.0
    %133 = vmatpush1.msra.mxu0 0.0
    %134 = vmatprep.subr.mxu0 0.0
    %135 = vmatpush1.msra.mxu0 0.0
    %136 = vmatprep.subr.mxu0 0.0
    %137 = vmatpush1.msra.mxu0 0.0
    %138 = vmatprep.subr.mxu0 0.0
    %139 = vmatpush1.msra.mxu0 0.0
    %140 = vmatprep.subr.mxu0 0.0
    %141 = vmatpush1.msra.mxu0 0.0
    %142 = vmatprep.subr.mxu0 0.0
    %143 = vmatpush1.msra.mxu0 0.0
    %144 = vmatprep.mubr.f32.mxu0 0.0
    %145 = vmatmul.mubr.f32.gmra.mrb[0].mxu0 %v75
    %v146 = vpop.f32.mrb[0].mxu0
    %v147 = vadd.f32 %v66, %v146
    %v148 = vpop.f32.mrb[0].mxu0
    %v149 = vadd.f32 %v70, %v148
    %150 = vmatprep.mubr.f32.mxu0 0.0
    %151 = vmatmul.mubr.f32.gmra.mrb[0].mxu0 %v78
    %v152 = vpop.f32.mrb[0].mxu0
    %v153 = vadd.f32 %v66, %v152
    %v154 = vpop.f32.mrb[0].mxu0
    %v155 = vadd.f32 %v70, %v154
    %156 = vdwg.mxu0
    %157 = vst [vmem:[#allocation7] sm:$0xff] %v147
    %158 = vst [vmem:[#allocation7 + $0x8] sm:$0xff] %v149
    %159 = vst [vmem:[#allocation7 + $0x10] sm:$0xff] %v153
    %160 = vst [vmem:[#allocation7 + $0x18] sm:$0xff] %v155
    // Predicated region
    $region22: #{tpu_custom_call.1} parent=1 // pred_check
      _
    $region23: #{tpu_custom_call.1} parent=1 // pred_check_branch
      %162 = sbr.rel (0) target = $region25
    $region24: #{tpu_custom_call.1} parent=1 // pred_region
      %s164 = ssub.s32 512, 512
      %165 = vsyncadd [#allocation4], %s164
      %s166 = sshll.u32 [#allocation7], 4
      %s167 = int_to_ptr.vmem [resolvable:$true] %s166
      %172 = dma.vmem_to_hbm [thread:$0]  %s167, 512, %s3, [#allocation4], 256, 256, 16
    $region25: #{tpu_custom_call.1} parent=1 // pred_fallthru
      _
    // Predicated region
    $region26: #{tpu_custom_call.1} parent=1 // pred_check
      _
    $region27: #{tpu_custom_call.1} parent=1 // pred_check_branch
      %174 = sbr.rel (0) target = $region29
    $region28: #{tpu_custom_call.1} parent=1 // pred_region
      %175 = dma.done [#allocation4], 512
    $region29: #{tpu_custom_call.1} parent=1 // pred_fallthru
      _
    %176 = vsyncpa [#allocation3], 1
    %177 = vsyncpa [#allocation6], 1
    %178 = vsyncpa [#allocation4], 1

</llo_original>
